<compile_context>
chip_gen: v7x
topology: tpu7x:2x2x1
jax: 0.10.0
libtpu: 0.0.40
codegen_flags: <defaults>
</compile_context>

<pallas_src>
import functools
import math
import warnings

import jax
import jax.numpy as jnp
from jax.experimental import pallas as pl
from jax.experimental.pallas import tpu as pltpu


def _round_up(x, m):
    return (x + m - 1) // m * m


def _cdiv(a, b):
    return -(-a // b)


def _gelu_tanh(x):
    # PyTorch nn.GELU(approximate='tanh'):
    #   0.5 * x * (1 + tanh(sqrt(2/pi) * (x + 0.044715 * x**3)))
    c = math.sqrt(2.0 / math.pi)
    return 0.5 * x * (1.0 + jnp.tanh(c * (x + 0.044715 * x * x * x)))


def _tpu_generation():
    """Best-effort TPU generation (5, 6, 7, ...) from device_kind; 0 if unknown."""
    try:
        kind = jax.devices()[0].device_kind.lower().replace(" ", "")
    except Exception:
        return 0
    for g in (7, 6, 5, 4):
        if f"v{g}" in kind or f"tpu{g}" in kind:
            return g
    return 0


def _vmem_capacity_bytes():
    """Physical VMEM per TensorCore; conservative 64 MiB fallback (v7x-sized)."""
    try:
        info = pltpu.get_tpu_info()
        cap = getattr(info, "vmem_capacity_bytes", None)
        if cap:
            return int(cap)
    except Exception:
        pass
    return 64 << 20


def _aligned_divisor(H, max_chunk, align=128):
    """Largest d <= max_chunk with H % d == 0 and d % align == 0; None if none."""
    d = (max_chunk // align) * align
    while d >= align:
        if H % d == 0:
            return d
        d -= align
    return None


def _pick_tile_h(H, target, align=128):
    """Pick a 128-aligned divisor of H close to `target`; falls back to H."""
    d = _aligned_divisor(H, min(target, H), align)
    if d is not None:
        return d
    d = _round_up(min(target, H) + 1, align)
    while d < H:
        if H % d == 0:
            return d
        d += align
    return H


# --------------------------- kernels ---------------------------------------


def _mlp_kernel_resident(x_ref, w1_ref, b1_ref, w2_ref, b2_ref, o_ref, *, gelu_dtype):
    # Weights fully resident; no accumulator scratch needed.
    h = jnp.dot(x_ref[...], w1_ref[...], preferred_element_type=jnp.float32)
    h = _gelu_tanh((h + b1_ref[...]).astype(gelu_dtype))
    out = jnp.dot(h.astype(w2_ref.dtype), w2_ref[...],
                  preferred_element_type=jnp.float32)
    o_ref[...] = (out + b2_ref[...]).astype(o_ref.dtype)


def _mlp_kernel_stream(x_ref, w1_ref, b1_ref, w2_ref, b2_ref, o_ref, acc_ref, *,
                       gelu_dtype):
    # Hidden-dim streaming: acc += gelu(x @ W1[:, hk] + b1[hk]) @ W2[hk, :]
    hk = pl.program_id(1)

    @pl.when(hk == 0)
    def _():
        acc_ref[...] = jnp.zeros_like(acc_ref)

    h = jnp.dot(x_ref[...], w1_ref[...], preferred_element_type=jnp.float32)
    h = _gelu_tanh((h + b1_ref[...]).astype(gelu_dtype))
    acc_ref[...] += jnp.dot(h.astype(w2_ref.dtype), w2_ref[...],
                            preferred_element_type=jnp.float32)

    @pl.when(hk == pl.num_programs(1) - 1)
    def _():
        o_ref[...] = (acc_ref[...] + b2_ref[...]).astype(o_ref.dtype)


# --------------------------- wrapper ----------------------------------------


def mlp_forward(x, w1, b1, w2, b2, *, tile_m=None, tile_h=None,
                compute_dtype=jnp.bfloat16):
    """x: (B, T, C); w1: (C, 4C); b1: (4C,); w2: (4C, C); b2: (C,).

    Weights are stored (in, out) so y = x @ W + b matches nn.Linear math.
    Pass w1/w2 already in `compute_dtype` to avoid a per-call cast (the wrapper
    only casts when the dtype differs).
    """
    B, T, C = x.shape
    H = w1.shape[1]
    assert w1.shape == (C, H) and w2.shape == (H, C)
    assert b1.shape == (H,) and b2.shape == (C,)
    M = B * T
    out_dtype = x.dtype

    gen = _tpu_generation()
    vmem_cap = _vmem_capacity_bytes()
    budget = int(0.60 * vmem_cap)          # tiling / residency budget
    vmem_cap_limit = int(0.80 * vmem_cap)  # hard cap handed to the compiler

    c_bytes = jnp.dtype(compute_dtype).itemsize
    o_bytes = jnp.dtype(out_dtype).itemsize
    # bf16 GELU on chips with a bf16 VPU/EUP (v6e, v7x); f32 on v5e / unknown.
    gelu_dtype = (compute_dtype
                  if (jnp.dtype(compute_dtype) == jnp.dtype(jnp.bfloat16) and gen >= 6)
                  else jnp.float32)
    g_bytes = jnp.dtype(gelu_dtype).itemsize

    def working_set(tm, th, resident, single_buf):
        w_bufs = 1 if (resident and single_buf) else 2
        ws = 2 * C * th * c_bytes * w_bufs        # w1 + w2 chunks
        ws += (th + C) * 4 * w_bufs               # f32 biases
        ws += 2 * tm * C * (c_bytes + o_bytes)    # double-buffered x / out row tiles
        ws += tm * th * (4 + g_bytes)             # f32 matmul result + GELU temp
        if not resident:
            ws += tm * C * 4                      # f32 accumulator scratch
        return ws

    # ---- row tile ------------------------------------------------------------
    user_tile_m = tile_m is not None
    tm = int(tile_m) if user_tile_m else 512
    tm = max(16, min(tm, _round_up(M, 16)))
    tm = _round_up(tm, 16)

    # ---- residency decision & hidden tiling ----------------------------------
    user_tile_h = tile_h is not None
    if user_tile_h:
        th = int(tile_h)
        if H % th != 0 or (th % 128 != 0 and th != H):
            th = H  # invalid request -> fall back to resident
    else:
        th = H if working_set(tm, H, True, True) <= budget else None

    if th == H:
        resident = True
        num_chunks = 1
    else:
        resident = False
        if th is None:
            target = 512 if gen == 5 else 1024
            th = _pick_tile_h(H, target)
            if th == H:          # no aligned divisor < H exists
                resident = True
        num_chunks = H // th
        if not resident:
            # v6e: streamed weights need larger row tiles to cross the MXU ridge.
            if not user_tile_m and gen == 6:
                tm = _round_up(min(1024, _round_up(M, 16)), 16)
            # Shrink tile_h, then tile_m, if the streamed working set is over budget.
            while working_set(tm, th, False, False) > budget and th > 128:
                smaller = _aligned_divisor(H, th // 2)
                if smaller is None:
                    break
                th = smaller
                num_chunks = H // th
            while working_set(tm, th, False, False) > budget and tm > 64:
                tm = _round_up(max(tm // 2, 64), 16)

    # v7x has 2 TensorCores: make sure the "parallel" row axis has >= 2 steps.
    if gen >= 7 and _cdiv(M, tm) < 2 and tm >= 32:
        tm = _round_up(tm // 2, 16)

    M_pad = _round_up(M, tm)
    grid_m = M_pad // tm

    # ---- operand prep (bf16 MXU operands, f32 biases) -------------------------
    # TODO(synk): for C not a multiple of 128 (e.g. GPT-2 XL C=1600) pad C to the
    # next multiple of 128 at the weight-layout level for lane-dense stores.
    x2d = x.reshape(M, C)
    if x2d.dtype != jnp.dtype(compute_dtype):
        x2d = x2d.astype(compute_dtype)
    if M_pad != M:
        x2d = jnp.pad(x2d, ((0, M_pad - M), (0, 0)))
    w1c = w1 if w1.dtype == jnp.dtype(compute_dtype) else w1.astype(compute_dtype)
    w2c = w2 if w2.dtype == jnp.dtype(compute_dtype) else w2.astype(compute_dtype)
    b1_2d = b1.reshape(1, H).astype(jnp.float32)
    b2_2d = b2.reshape(1, C).astype(jnp.float32)

    # ---- VMEM limit (generation-aware cap) ------------------------------------
    needed = working_set(tm, th, resident, single_buf=False)
    vmem_limit = int(min(max(int(1.3 * needed), 32 << 20), vmem_cap_limit))

    if resident:
        def build(single_buf):
            wmode = dict(pipeline_mode=pl.Buffered(1)) if single_buf else {}
            grid_spec = pltpu.PrefetchScalarGridSpec(
                num_scalar_prefetch=0,
                grid=(grid_m,),
                in_specs=[
                    pl.BlockSpec((tm, C), lambda i: (i, 0)),            # x rows
                    pl.BlockSpec((C, H), lambda i: (0, 0), **wmode),    # w1
                    pl.BlockSpec((1, H), lambda i: (0, 0), **wmode),    # b1
                    pl.BlockSpec((H, C), lambda i: (0, 0), **wmode),    # w2
                    pl.BlockSpec((1, C), lambda i: (0, 0), **wmode),    # b2
                ],
                out_specs=pl.BlockSpec((tm, C), lambda i: (i, 0)),
            )
            return pl.pallas_call(
                functools.partial(_mlp_kernel_resident, gelu_dtype=gelu_dtype),
                out_shape=jax.ShapeDtypeStruct((M_pad, C), out_dtype),
                grid_spec=grid_spec,
                compiler_params=pltpu.CompilerParams(
                    dimension_semantics=("parallel",),
                    vmem_limit_bytes=vmem_limit),
            )

        try:
            out = build(True)(x2d, w1c, b1_2d, w2c, b2_2d)
        except Exception as e:  # log + fall back to double-buffered resident weights
            warnings.warn(
                "mlp_forward: single-buffered resident weights failed "
                f"({type(e).__name__}: {e}); falling back to double-buffered.")
            out = build(False)(x2d, w1c, b1_2d, w2c, b2_2d)
    else:
        grid_spec = pltpu.PrefetchScalarGridSpec(
            num_scalar_prefetch=0,
            grid=(grid_m, num_chunks),
            in_specs=[
                pl.BlockSpec((tm, C), lambda i, k: (i, 0)),    # x rows
                pl.BlockSpec((C, th), lambda i, k: (0, k)),    # w1 chunk
                pl.BlockSpec((1, th), lambda i, k: (0, k)),    # b1 chunk
                pl.BlockSpec((th, C), lambda i, k: (k, 0)),    # w2 chunk
                pl.BlockSpec((1, C), lambda i, k: (0, 0)),     # b2
            ],
            out_specs=pl.BlockSpec((tm, C), lambda i, k: (i, 0)),
            scratch_shapes=[pltpu.VMEM((tm, C), jnp.float32)],
        )
        out = pl.pallas_call(
            functools.partial(_mlp_kernel_stream, gelu_dtype=gelu_dtype),
            out_shape=jax.ShapeDtypeStruct((M_pad, C), out_dtype),
            grid_spec=grid_spec,
            compiler_params=pltpu.CompilerParams(
                dimension_semantics=("parallel", "arbitrary"),
                vmem_limit_bytes=vmem_limit),
        )(x2d, w1c, b1_2d, w2c, b2_2d)

    if M_pad != M:
        out = out[:M]
    return out.reshape(B, T, C)


# --------------------------- self-test ---------------------------------------


def _ref_mlp(x, w1, b1, w2, b2):
    h = x @ w1 + b1
    h = 0.5 * h * (1.0 + jnp.tanh(math.sqrt(2.0 / math.pi)
                                  * (h + 0.044715 * h ** 3)))
    return h @ w2 + b2


if __name__ == "__main__":
    # ---- Test 1: small GPT-2-ish config, resident-weight path -----------------
    B, T, C = 2, 8, 32
    H = 4 * C

    key = jax.random.PRNGKey(0)
    kx, kw1, kb1, kw2, kb2, kx2, kw3, kb3, kw4, kb4 = jax.random.split(key, 10)

    x = jax.random.normal(kx, (B, T, C), dtype=jnp.float32)
    # nn.Linear stores weight as (out, in); we build the (in, out) transposes
    # directly so y = x @ W + b is identical math.
    w1 = jax.random.normal(kw1, (C, H), dtype=jnp.float32) * 0.02
    b1 = jax.random.normal(kb1, (H,), dtype=jnp.float32) * 0.02
    w2 = jax.random.normal(kw2, (H, C), dtype=jnp.float32) * 0.02
    b2 = jax.random.normal(kb2, (C,), dtype=jnp.float32) * 0.02

    y_ref = _ref_mlp(x, w1, b1, w2, b2)

    # Exact-math check with f32 operands.
    y_f32 = mlp_forward(x, w1, b1, w2, b2, compute_dtype=jnp.float32)
    jax.block_until_ready(y_f32)
    assert jnp.allclose(y_f32, y_ref, atol=1e-5, rtol=1e-5), "f32 mismatch vs reference"

    # Default bf16-operand path: weights pre-cast once (hoisted out of the call).
    w1_bf = w1.astype(jnp.bfloat16)
    w2_bf = w2.astype(jnp.bfloat16)
    y_bf = mlp_forward(x, w1_bf, b1, w2_bf, b2)
    jax.block_until_ready(y_bf)
    assert y_bf.shape == (B, T, C) and y_bf.dtype == x.dtype
    assert jnp.allclose(y_bf, y_ref, atol=1e-2, rtol=1e-2), "bf16 mismatch vs reference"

    # ---- Test 2: hidden-dim streaming path (tile_h < H) ----------------------
    C2 = 128
    H2 = 4 * C2
    x2 = jax.random.normal(kx2, (B, T, C2), dtype=jnp.float32)
    w3 = jax.random.normal(kw3, (C2, H2), dtype=jnp.float32) * 0.02
    b3 = jax.random.normal(kb3, (H2,), dtype=jnp.float32) * 0.02
    w4 = jax.random.normal(kw4, (H2, C2), dtype=jnp.float32) * 0.02
    b4 = jax.random.normal(kb4, (C2,), dtype=jnp.float32) * 0.02

    y2_ref = _ref_mlp(x2, w3, b3, w4, b4)
    y2 = mlp_forward(x2, w3, b3, w4, b4, tile_h=256, compute_dtype=jnp.float32)
    jax.block_until_ready(y2)
    assert jnp.allclose(y2, y2_ref, atol=1e-5, rtol=1e-5), "streaming mismatch vs reference"

    print("KERNEL_OK")
</pallas_src>

<mosaic_0001>
module attributes {stable_mosaic.version = 11 : i64} {
  func.func @_mlp_kernel_resident(%arg0: i32, %arg1: memref<16x32xf32, #tpu.memory_space<vmem>>, %arg2: memref<32x128xf32, #tpu.memory_space<vmem>>, %arg3: memref<1x128xf32, #tpu.memory_space<vmem>>, %arg4: memref<128x32xf32, #tpu.memory_space<vmem>>, %arg5: memref<1x32xf32, #tpu.memory_space<vmem>>, %arg6: memref<16x32xf32, #tpu.memory_space<vmem>>) attributes {dimension_semantics = [#tpu.dimension_semantics<parallel>], iteration_bounds = array<i64: 1>, scalar_prefetch = 0 : i64, scratch_operands = 0 : i64, tpu.core_type = #tpu.core_type<tc>, window_params = [{transform_indices = @transform_0, window_bounds = array<i64: 16, 32>}, {pipeline_mode = #tpu.pipeline_mode<synchronous>, transform_indices = @transform_1, window_bounds = array<i64: 32, 128>}, {pipeline_mode = #tpu.pipeline_mode<synchronous>, transform_indices = @transform_2, window_bounds = array<i64: 1, 128>}, {pipeline_mode = #tpu.pipeline_mode<synchronous>, transform_indices = @transform_3, window_bounds = array<i64: 128, 32>}, {pipeline_mode = #tpu.pipeline_mode<synchronous>, transform_indices = @transform_4, window_bounds = array<i64: 1, 32>}, {transform_indices = @transform_5, window_bounds = array<i64: 16, 32>}]} {
    %c0 = arith.constant 0 : index
    %c0_0 = arith.constant 0 : index
    %0 = vector.load %arg1[%c0, %c0_0] : memref<16x32xf32, #tpu.memory_space<vmem>>, vector<16x32xf32>
    %c0_1 = arith.constant 0 : index
    %c0_2 = arith.constant 0 : index
    %1 = vector.load %arg2[%c0_1, %c0_2] : memref<32x128xf32, #tpu.memory_space<vmem>>, vector<32x128xf32>
    %cst = arith.constant dense<0.000000e+00> : vector<16x128xf32>
    %2 = tpu.matmul %0, %1, %cst {dimension_numbers = #tpu.dot_dimension_numbers<[1], [0], [0], [1], [0, 0, 1, 1], [], []>} : vector<16x32xf32>, vector<32x128xf32>, vector<16x128xf32> -> vector<16x128xf32>
    %c0_3 = arith.constant 0 : index
    %c0_4 = arith.constant 0 : index
    %3 = vector.load %arg3[%c0_3, %c0_4] : memref<1x128xf32, #tpu.memory_space<vmem>>, vector<1x128xf32>
    %4 = vector.broadcast %3 : vector<1x128xf32> to vector<16x128xf32>
    %5 = arith.addf %2, %4 : vector<16x128xf32>
    %cst_5 = arith.constant 5.000000e-01 : f32
    %6 = vector.broadcast %cst_5 : f32 to vector<16x128xf32>
    %7 = arith.mulf %6, %5 : vector<16x128xf32>
    %cst_6 = arith.constant 4.471500e-02 : f32
    %8 = vector.broadcast %cst_6 : f32 to vector<16x128xf32>
    %9 = arith.mulf %8, %5 : vector<16x128xf32>
    %10 = arith.mulf %9, %5 : vector<16x128xf32>
    %11 = arith.mulf %10, %5 : vector<16x128xf32>
    %12 = arith.addf %5, %11 : vector<16x128xf32>
    %cst_7 = arith.constant 0.797884583 : f32
    %13 = vector.broadcast %cst_7 : f32 to vector<16x128xf32>
    %14 = arith.mulf %13, %12 : vector<16x128xf32>
    %15 = math.tanh %14 : vector<16x128xf32>
    %cst_8 = arith.constant 1.000000e+00 : f32
    %16 = vector.broadcast %cst_8 : f32 to vector<16x128xf32>
    %17 = arith.addf %16, %15 : vector<16x128xf32>
    %18 = arith.mulf %7, %17 : vector<16x128xf32>
    %c0_9 = arith.constant 0 : index
    %c0_10 = arith.constant 0 : index
    %19 = vector.load %arg4[%c0_9, %c0_10] : memref<128x32xf32, #tpu.memory_space<vmem>>, vector<128x32xf32>
    %cst_11 = arith.constant dense<0.000000e+00> : vector<16x32xf32>
    %20 = tpu.matmul %18, %19, %cst_11 {dimension_numbers = #tpu.dot_dimension_numbers<[1], [0], [0], [1], [0, 0, 1, 1], [], []>} : vector<16x128xf32>, vector<128x32xf32>, vector<16x32xf32> -> vector<16x32xf32>
    %c0_12 = arith.constant 0 : index
    %c0_13 = arith.constant 0 : index
    %21 = vector.load %arg5[%c0_12, %c0_13] : memref<1x32xf32, #tpu.memory_space<vmem>>, vector<1x32xf32>
    %22 = vector.broadcast %21 : vector<1x32xf32> to vector<16x32xf32>
    %23 = arith.addf %20, %22 : vector<16x32xf32>
    %c0_14 = arith.constant 0 : index
    %c0_15 = arith.constant 0 : index
    %24 = vector.load %arg6[%c0_14, %c0_15] : memref<16x32xf32, #tpu.memory_space<vmem>>, vector<16x32xf32>
    tpu.vector_store %arg6[%c0_14, %c0_15], %23 {strides = array<i32>} : memref<16x32xf32, #tpu.memory_space<vmem>>, vector<16x32xf32>,
    return
  }
  func.func @transform_0(%arg0: i32) -> (i32, i32) {
    %c0_i32 = arith.constant 0 : i32
    %c0_i32_0 = arith.constant 0 : i32
    return %arg0, %c0_i32 : i32, i32
  }
  func.func @transform_1(%arg0: i32) -> (i32, i32) {
    %c0_i32 = arith.constant 0 : i32
    %c0_i32_0 = arith.constant 0 : i32
    %c0_i32_1 = arith.constant 0 : i32
    return %c0_i32, %c0_i32_0 : i32, i32
  }
  func.func @transform_2(%arg0: i32) -> (i32, i32) {
    %c0_i32 = arith.constant 0 : i32
    %c0_i32_0 = arith.constant 0 : i32
    %c0_i32_1 = arith.constant 0 : i32
    return %c0_i32, %c0_i32_0 : i32, i32
  }
  func.func @transform_3(%arg0: i32) -> (i32, i32) {
    %c0_i32 = arith.constant 0 : i32
    %c0_i32_0 = arith.constant 0 : i32
    %c0_i32_1 = arith.constant 0 : i32
    return %c0_i32, %c0_i32_0 : i32, i32
  }
  func.func @transform_4(%arg0: i32) -> (i32, i32) {
    %c0_i32 = arith.constant 0 : i32
    %c0_i32_0 = arith.constant 0 : i32
    %c0_i32_1 = arith.constant 0 : i32
    return %c0_i32, %c0_i32_0 : i32, i32
  }
  func.func @transform_5(%arg0: i32) -> (i32, i32) {
    %c0_i32 = arith.constant 0 : i32
    %c0_i32_0 = arith.constant 0 : i32
    return %arg0, %c0_i32 : i32, i32
  }
}

module attributes {stable_mosaic.version = 11 : i64} {
  func.func @_mlp_kernel_resident(%arg0: i32, %arg1: memref<16x32xf32, #tpu.memory_space<vmem>>, %arg2: memref<32x128xf32, #tpu.memory_space<vmem>>, %arg3: memref<1x128xf32, #tpu.memory_space<vmem>>, %arg4: memref<128x32xf32, #tpu.memory_space<vmem>>, %arg5: memref<1x32xf32, #tpu.memory_space<vmem>>, %arg6: memref<16x32xf32, #tpu.memory_space<vmem>>) attributes {dimension_semantics = [#tpu.dimension_semantics<parallel>], iteration_bounds = array<i64: 1>, scalar_prefetch = 0 : i64, scratch_operands = 0 : i64, tpu.core_type = #tpu.core_type<tc>, window_params = [{transform_indices = @transform_0, window_bounds = array<i64: 16, 32>}, {pipeline_mode = #tpu.pipeline_mode<synchronous>, transform_indices = @transform_1, window_bounds = array<i64: 32, 128>}, {pipeline_mode = #tpu.pipeline_mode<synchronous>, transform_indices = @transform_2, window_bounds = array<i64: 1, 128>}, {pipeline_mode = #tpu.pipeline_mode<synchronous>, transform_indices = @transform_3, window_bounds = array<i64: 128, 32>}, {pipeline_mode = #tpu.pipeline_mode<synchronous>, transform_indices = @transform_4, window_bounds = array<i64: 1, 32>}, {transform_indices = @transform_5, window_bounds = array<i64: 16, 32>}]} {
    %c0 = arith.constant 0 : index
    %c0_0 = arith.constant 0 : index
    %0 = vector.load %arg1[%c0, %c0_0] : memref<16x32xf32, #tpu.memory_space<vmem>>, vector<16x32xf32>
    %c0_1 = arith.constant 0 : index
    %c0_2 = arith.constant 0 : index
    %1 = vector.load %arg2[%c0_1, %c0_2] : memref<32x128xf32, #tpu.memory_space<vmem>>, vector<32x128xf32>
    %cst = arith.constant dense<0.000000e+00> : vector<16x128xf32>
    %2 = tpu.matmul %0, %1, %cst {dimension_numbers = #tpu.dot_dimension_numbers<[1], [0], [0], [1], [0, 0, 1, 1], [], []>} : vector<16x32xf32>, vector<32x128xf32>, vector<16x128xf32> -> vector<16x128xf32>
    %c0_3 = arith.constant 0 : index
    %c0_4 = arith.constant 0 : index
    %3 = vector.load %arg3[%c0_3, %c0_4] : memref<1x128xf32, #tpu.memory_space<vmem>>, vector<1x128xf32>
    %4 = vector.broadcast %3 : vector<1x128xf32> to vector<16x128xf32>
    %5 = arith.addf %2, %4 : vector<16x128xf32>
    %cst_5 = arith.constant 5.000000e-01 : f32
    %6 = vector.broadcast %cst_5 : f32 to vector<16x128xf32>
    %7 = arith.mulf %6, %5 : vector<16x128xf32>
    %cst_6 = arith.constant 4.471500e-02 : f32
    %8 = vector.broadcast %cst_6 : f32 to vector<16x128xf32>
    %9 = arith.mulf %8, %5 : vector<16x128xf32>
    %10 = arith.mulf %9, %5 : vector<16x128xf32>
    %11 = arith.mulf %10, %5 : vector<16x128xf32>
    %12 = arith.addf %5, %11 : vector<16x128xf32>
    %cst_7 = arith.constant 0.797884583 : f32
    %13 = vector.broadcast %cst_7 : f32 to vector<16x128xf32>
    %14 = arith.mulf %13, %12 : vector<16x128xf32>
    %15 = math.tanh %14 : vector<16x128xf32>
    %cst_8 = arith.constant 1.000000e+00 : f32
    %16 = vector.broadcast %cst_8 : f32 to vector<16x128xf32>
    %17 = arith.addf %16, %15 : vector<16x128xf32>
    %18 = arith.mulf %7, %17 : vector<16x128xf32>
    %c0_9 = arith.constant 0 : index
    %c0_10 = arith.constant 0 : index
    %19 = vector.load %arg4[%c0_9, %c0_10] : memref<128x32xf32, #tpu.memory_space<vmem>>, vector<128x32xf32>
    %cst_11 = arith.constant dense<0.000000e+00> : vector<16x32xf32>
    %20 = tpu.matmul %18, %19, %cst_11 {dimension_numbers = #tpu.dot_dimension_numbers<[1], [0], [0], [1], [0, 0, 1, 1], [], []>} : vector<16x128xf32>, vector<128x32xf32>, vector<16x32xf32> -> vector<16x32xf32>
    %c0_12 = arith.constant 0 : index
    %c0_13 = arith.constant 0 : index
    %21 = vector.load %arg5[%c0_12, %c0_13] : memref<1x32xf32, #tpu.memory_space<vmem>>, vector<1x32xf32>
    %22 = vector.broadcast %21 : vector<1x32xf32> to vector<16x32xf32>
    %23 = arith.addf %20, %22 : vector<16x32xf32>
    %c0_14 = arith.constant 0 : index
    %c0_15 = arith.constant 0 : index
    %24 = vector.load %arg6[%c0_14, %c0_15] : memref<16x32xf32, #tpu.memory_space<vmem>>, vector<16x32xf32>
    tpu.vector_store %arg6[%c0_14, %c0_15], %23 {strides = array<i32>} : memref<16x32xf32, #tpu.memory_space<vmem>>, vector<16x32xf32>,
    return
  }
  func.func @transform_0(%arg0: i32) -> (i32, i32) {
    %c0_i32 = arith.constant 0 : i32
    %c0_i32_0 = arith.constant 0 : i32
    return %arg0, %c0_i32 : i32, i32
  }
  func.func @transform_1(%arg0: i32) -> (i32, i32) {
    %c0_i32 = arith.constant 0 : i32
    %c0_i32_0 = arith.constant 0 : i32
    %c0_i32_1 = arith.constant 0 : i32
    return %c0_i32, %c0_i32_0 : i32, i32
  }
  func.func @transform_2(%arg0: i32) -> (i32, i32) {
    %c0_i32 = arith.constant 0 : i32
    %c0_i32_0 = arith.constant 0 : i32
    %c0_i32_1 = arith.constant 0 : i32
    return %c0_i32, %c0_i32_0 : i32, i32
  }
  func.func @transform_3(%arg0: i32) -> (i32, i32) {
    %c0_i32 = arith.constant 0 : i32
    %c0_i32_0 = arith.constant 0 : i32
    %c0_i32_1 = arith.constant 0 : i32
    return %c0_i32, %c0_i32_0 : i32, i32
  }
  func.func @transform_4(%arg0: i32) -> (i32, i32) {
    %c0_i32 = arith.constant 0 : i32
    %c0_i32_0 = arith.constant 0 : i32
    %c0_i32_1 = arith.constant 0 : i32
    return %c0_i32, %c0_i32_0 : i32, i32
  }
  func.func @transform_5(%arg0: i32) -> (i32, i32) {
    %c0_i32 = arith.constant 0 : i32
    %c0_i32_0 = arith.constant 0 : i32
    return %arg0, %c0_i32 : i32, i32
  }
}

</mosaic_0001>

<llo_original>
// kernel: tpu_custom_call.1
$region0: #{tpu_custom_call.1}
  #allocation0 [shape = 'u32[]', space=smem, size = 0x4, offset = 0x4, fixed_abs, tag = 'smem constant byte address 0x4 - core index']
  #allocation1 [shape = 'u32[144,128]{1,0:T(1,128)}', space=vmem, size = 0x12000, scoped, tag = 'internal scratch']
  %s0 = inlined_call_operand.vmem [shape: f32[16,32], index: 0, kind: input, shape index: {}]
  %s1 = inlined_call_operand.vmem [shape: f32[32,128], index: 1, kind: input, shape index: {}]
  %s2 = inlined_call_operand.vmem [shape: f32[1,128], index: 2, kind: input, shape index: {}]
  %s3 = inlined_call_operand.vmem [shape: f32[128,32], index: 3, kind: input, shape index: {}]
  %s4 = inlined_call_operand.vmem [shape: f32[1,32], index: 4, kind: input, shape index: {}]
  %s5 = inlined_call_operand.hbm [shape: f32[16,32], index: 5, kind: output, shape index: {}]
  %s6 = sld [smem:[#allocation0]]
  $region30: #{tpu_custom_call.1} parent=0
    _
  %s8 = ssub.s32 1, %s6
  %s9 = scalar_select 0, %s8, %s6
  $region1: #{tpu_custom_call.1} parent=0
    #allocation2 [shape = 'u8[8192]{0}', space=vmem, size = 0x2000, scoped, tag = 'output window, operand 0, single buffered']
    #allocation3 [shape = 's32[1]{0}', space=sflag, size = 0x4, scoped, tag = 'scoped memory for tpu_custom_call.1']
    %10 = vsyncpa [#allocation3], 0
    // Predicated region
    $region2: #{tpu_custom_call.1} parent=1 // pred_check
      _
    $region3: #{tpu_custom_call.1} parent=1 // pred_check_branch
      %12 = sbr.rel (0) target = $region5
    $region4: #{tpu_custom_call.1} parent=1 // pred_region
      _
    $region5: #{tpu_custom_call.1} parent=1 // pred_fallthru
      _
    // Predicated region
    $region6: #{tpu_custom_call.1} parent=1 // pred_check
      _
    $region7: #{tpu_custom_call.1} parent=1 // pred_check_branch
      %14 = sbr.rel (0) target = $region9
    $region8: #{tpu_custom_call.1} parent=1 // pred_region
      _
    $region9: #{tpu_custom_call.1} parent=1 // pred_fallthru
      _
    // Predicated region
    $region10: #{tpu_custom_call.1} parent=1 // pred_check
      _
    $region11: #{tpu_custom_call.1} parent=1 // pred_check_branch
      %16 = sbr.rel (0) target = $region13
    $region12: #{tpu_custom_call.1} parent=1 // pred_region
      _
    $region13: #{tpu_custom_call.1} parent=1 // pred_fallthru
      _
    // Predicated region
    $region14: #{tpu_custom_call.1} parent=1 // pred_check
      _
    $region15: #{tpu_custom_call.1} parent=1 // pred_check_branch
      %18 = sbr.rel (0) target = $region17
    $region16: #{tpu_custom_call.1} parent=1 // pred_region
      _
    $region17: #{tpu_custom_call.1} parent=1 // pred_fallthru
      _
    // Predicated region
    $region18: #{tpu_custom_call.1} parent=1 // pred_check
      _
    $region19: #{tpu_custom_call.1} parent=1 // pred_check_branch
      %20 = sbr.rel (0) target = $region21
    $region20: #{tpu_custom_call.1} parent=1 // pred_region
      _
    $region21: #{tpu_custom_call.1} parent=1 // pred_fallthru
      _
    %v21 = vld [vmem:[%s0] sm:$0xff]
    %v22 = vld [vmem:[%s0 + $0x8] sm:$0xff]
    %v23 = vld [vmem:[%s1] sm:$0xff]
    %v24 = vld [vmem:[%s1 + $0x8] sm:$0xff]
    %v25 = vld [vmem:[%s1 + $0x10] sm:$0xff]
    %v26 = vld [vmem:[%s1 + $0x18] sm:$0xff]
    %v27 = vld [vmem:[%s2] sm:$0x1]
    %v29 = vlaneseq
    %v30 = vshrl.u32 %v29, 7
    %v31 = vsub.s32 0, %v30
    %v32 = vrot.slane %v27, %v31
    %vm34 = vcmask 261120
    %v36 = vsel %vm34, %v21, 0
    %v39 = vsel %vm34, %v22, 0
    %41 = vmatprep.subr.mxu0 0.0
    %42 = vmatpush1.msra.mxu0 %v23
    %43 = vmatprep.subr.mxu0 0.0
    %44 = vmatpush1.msra.mxu0 %v24
    %45 = vmatprep.subr.mxu0 0.0
    %46 = vmatpush1.msra.mxu0 %v25
    %47 = vmatprep.subr.mxu0 0.0
    %48 = vmatpush1.msra.mxu0 %v26
    %49 = vmatprep.subr.mxu0 0.0
    %50 = vmatpush1.msra.mxu0 0.0
    %51 = vmatprep.subr.mxu0 0.0
    %52 = vmatpush1.msra.mxu0 0.0
    %53 = vmatprep.subr.mxu0 0.0
    %54 = vmatpush1.msra.mxu0 0.0
    %55 = vmatprep.subr.mxu0 0.0
    %56 = vmatpush1.msra.mxu0 0.0
    %57 = vmatprep.subr.mxu0 0.0
    %58 = vmatpush1.msra.mxu0 0.0
    %59 = vmatprep.subr.mxu0 0.0
    %60 = vmatpush1.msra.mxu0 0.0
    %61 = vmatprep.subr.mxu0 0.0
    %62 = vmatpush1.msra.mxu0 0.0
    %63 = vmatprep.subr.mxu0 0.0
    %64 = vmatpush1.msra.mxu0 0.0
    %65 = vmatprep.subr.mxu0 0.0
    %66 = vmatpush1.msra.mxu0 0.0
    %67 = vmatprep.subr.mxu0 0.0
    %68 = vmatpush1.msra.mxu0 0.0
    %69 = vmatprep.subr.mxu0 0.0
    %70 = vmatpush1.msra.mxu0 0.0
    %71 = vmatprep.subr.mxu0 0.0
    %72 = vmatpush1.msra.mxu0 0.0
    %73 = vmatprep.subr.mxu0 0.0
    %74 = vmatpush1.msra.mxu0 0.0
    %75 = vmatprep.subr.mxu0 0.0
    %76 = vmatpush1.msra.mxu0 0.0
    %77 = vmatprep.subr.mxu0 0.0
    %78 = vmatpush1.msra.mxu0 0.0
    %79 = vmatprep.subr.mxu0 0.0
    %80 = vmatpush1.msra.mxu0 0.0
    %81 = vmatprep.subr.mxu0 0.0
    %82 = vmatpush1.msra.mxu0 0.0
    %83 = vmatprep.subr.mxu0 0.0
    %84 = vmatpush1.msra.mxu0 0.0
    %85 = vmatprep.subr.mxu0 0.0
    %86 = vmatpush1.msra.mxu0 0.0
    %87 = vmatprep.subr.mxu0 0.0
    %88 = vmatpush1.msra.mxu0 0.0
    %89 = vmatprep.subr.mxu0 0.0
    %90 = vmatpush1.msra.mxu0 0.0
    %91 = vmatprep.subr.mxu0 0.0
    %92 = vmatpush1.msra.mxu0 0.0
    %93 = vmatprep.subr.mxu0 0.0
    %94 = vmatpush1.msra.mxu0 0.0
    %95 = vmatprep.subr.mxu0 0.0
    %96 = vmatpush1.msra.mxu0 0.0
    %97 = vmatprep.subr.mxu0 0.0
    %98 = vmatpush1.msra.mxu0 0.0
    %99 = vmatprep.subr.mxu0 0.0
    %100 = vmatpush1.msra.mxu0 0.0
    %101 = vmatprep.subr.mxu0 0.0
    %102 = vmatpush1.msra.mxu0 0.0
    %103 = vmatprep.subr.mxu0 0.0
    %104 = vmatpush1.msra.mxu0 0.0
    %105 = vmatprep.mubr.f32.mxu0 0.0
    %106 = vmatmul.mubr.f32.gmra.mrb[0].mxu0 %v36
    %v107 = vpop.f32.mrb[0].mxu0
    %v108 = vadd.f32 %v32, %v107
    %v109 = vpop.f32.mrb[0].mxu0
    %110 = vmatprep.mubr.f32.mxu0 0.0
    %111 = vmatmul.mubr.f32.gmra.mrb[0].mxu0 %v39
    %v112 = vpop.f32.mrb[0].mxu0
    %v113 = vadd.f32 %v32, %v112
    %v114 = vpop.f32.mrb[0].mxu0
    %115 = vdwg.mxu0
    %v116 = vmul.f32 %v108, 0.5
    %v117 = vmul.f32 %v113, 0.5
    %v118 = vmul.f32 %v108, 0.044715
    %v119 = vmul.f32 %v113, 0.044715
    %v120 = vmul.f32 %v118, %v108
    %v121 = vmul.f32 %v119, %v113
    %v122 = vmul.f32 %v120, %v108
    %v123 = vmul.f32 %v121, %v113
    %v124 = vadd.f32 %v108, %v122
    %v125 = vadd.f32 %v113, %v123
    %v126 = vmul.f32 %v124, 0.7978846
    %v127 = vmul.f32 %v125, 0.7978846
    %v128 = vtanh.pop %v126
    %v129 = vtanh.pop %v127
    %v130 = vadd.f32 %v128, 1.0
    %v131 = vadd.f32 %v129, 1.0
    %v132 = vmul.f32 %v116, %v130
    %v133 = vmul.f32 %v117, %v131
    %v134 = vld [vmem:[%s3] sm:$0xff]
    %v135 = vld [vmem:[%s3 + $0x8] sm:$0xff]
    %v136 = vld [vmem:[%s3 + $0x10] sm:$0xff]
    %v137 = vld [vmem:[%s3 + $0x18] sm:$0xff]
    %v138 = vld [vmem:[%s3 + $0x20] sm:$0xff]
    %v139 = vld [vmem:[%s3 + $0x28] sm:$0xff]
    %v140 = vld [vmem:[%s3 + $0x30] sm:$0xff]
    %v141 = vld [vmem:[%s3 + $0x38] sm:$0xff]
    %v142 = vld [vmem:[%s3 + $0x40] sm:$0xff]
    %v143 = vld [vmem:[%s3 + $0x48] sm:$0xff]
    %v144 = vld [vmem:[%s3 + $0x50] sm:$0xff]
    %v145 = vld [vmem:[%s3 + $0x58] sm:$0xff]
    %v146 = vld [vmem:[%s3 + $0x60] sm:$0xff]
    %v147 = vld [vmem:[%s3 + $0x68] sm:$0xff]
    %v148 = vld [vmem:[%s3 + $0x70] sm:$0xff]
    %v149 = vld [vmem:[%s3 + $0x78] sm:$0xff]
    %v150 = vld [vmem:[%s4] sm:$0x1]
    %v152 = vlaneseq
    %v153 = vshrl.u32 %v152, 7
    %v154 = vsub.s32 0, %v153
    %v155 = vrot.slane %v150, %v154
    %157 = vmatprep.subr.mxu0 0.0
    %158 = vmatpush1.msra.mxu0 %v134
    %159 = vmatprep.subr.mxu0 0.0
    %160 = vmatpush1.msra.mxu0 %v135
    %161 = vmatprep.subr.mxu0 0.0
    %162 = vmatpush1.msra.mxu0 %v136
    %163 = vmatprep.subr.mxu0 0.0
    %164 = vmatpush1.msra.mxu0 %v137
    %165 = vmatprep.subr.mxu0 0.0
    %166 = vmatpush1.msra.mxu0 %v138
    %167 = vmatprep.subr.mxu0 0.0
    %168 = vmatpush1.msra.mxu0 %v139
    %169 = vmatprep.subr.mxu0 0.0
    %170 = vmatpush1.msra.mxu0 %v140
    %171 = vmatprep.subr.mxu0 0.0
    %172 = vmatpush1.msra.mxu0 %v141
    %173 = vmatprep.subr.mxu0 0.0
    %174 = vmatpush1.msra.mxu0 %v142
    %175 = vmatprep.subr.mxu0 0.0
    %176 = vmatpush1.msra.mxu0 %v143
    %177 = vmatprep.subr.mxu0 0.0
    %178 = vmatpush1.msra.mxu0 %v144
    %179 = vmatprep.subr.mxu0 0.0
    %180 = vmatpush1.msra.mxu0 %v145
    %181 = vmatprep.subr.mxu0 0.0
    %182 = vmatpush1.msra.mxu0 %v146
    %183 = vmatprep.subr.mxu0 0.0
    %184 = vmatpush1.msra.mxu0 %v147
    %185 = vmatprep.subr.mxu0 0.0
    %186 = vmatpush1.msra.mxu0 %v148
    %187 = vmatprep.subr.mxu0 0.0
    %188 = vmatpush1.msra.mxu0 %v149
    %189 = vmatprep.subr.mxu0 0.0
    %190 = vmatpush1.msra.mxu0 0.0
    %191 = vmatprep.subr.mxu0 0.0
    %192 = vmatpush1.msra.mxu0 0.0
    %193 = vmatprep.subr.mxu0 0.0
    %194 = vmatpush1.msra.mxu0 0.0
    %195 = vmatprep.subr.mxu0 0.0
    %196 = vmatpush1.msra.mxu0 0.0
    %197 = vmatprep.subr.mxu0 0.0
    %198 = vmatpush1.msra.mxu0 0.0
    %199 = vmatprep.subr.mxu0 0.0
    %200 = vmatpush1.msra.mxu0 0.0
    %201 = vmatprep.subr.mxu0 0.0
    %202 = vmatpush1.msra.mxu0 0.0
    %203 = vmatprep.subr.mxu0 0.0
    %204 = vmatpush1.msra.mxu0 0.0
    %205 = vmatprep.subr.mxu0 0.0
    %206 = vmatpush1.msra.mxu0 0.0
    %207 = vmatprep.subr.mxu0 0.0
    %208 = vmatpush1.msra.mxu0 0.0
    %209 = vmatprep.subr.mxu0 0.0
    %210 = vmatpush1.msra.mxu0 0.0
    %211 = vmatprep.subr.mxu0 0.0
    %212 = vmatpush1.msra.mxu0 0.0
    %213 = vmatprep.subr.mxu0 0.0
    %214 = vmatpush1.msra.mxu0 0.0
    %215 = vmatprep.subr.mxu0 0.0
    %216 = vmatpush1.msra.mxu0 0.0
    %217 = vmatprep.subr.mxu0 0.0
    %218 = vmatpush1.msra.mxu0 0.0
    %219 = vmatprep.subr.mxu0 0.0
    %220 = vmatpush1.msra.mxu0 0.0
    %221 = vmatprep.mubr.f32.mxu0 0.0
    %222 = vmatmul.mubr.f32.gmra.mrb[0].mxu0 %v132
    %v223 = vpop.f32.mrb[0].mxu0
    %v224 = vadd.f32 %v155, %v223
    %v225 = vpop.f32.mrb[0].mxu0
    %226 = vmatprep.mubr.f32.mxu0 0.0
    %227 = vmatmul.mubr.f32.gmra.mrb[0].mxu0 %v133
    %v228 = vpop.f32.mrb[0].mxu0
    %v229 = vadd.f32 %v155, %v228
    %v230 = vpop.f32.mrb[0].mxu0
    %231 = vdwg.mxu0
    %232 = vst.msk [vmem:[#allocation2] sm:$0xff] %vm34, %v224
    %233 = vst.msk [vmem:[#allocation2 + $0x8] sm:$0xff] %vm34, %v229
    // Predicated region
    $region22: #{tpu_custom_call.1} parent=1 // pred_check
      _
    $region23: #{tpu_custom_call.1} parent=1 // pred_check_branch
      %235 = sbr.rel (0) target = $region25
    $region24: #{tpu_custom_call.1} parent=1 // pred_region
      %s237 = ssub.s32 256, 256
      %238 = vsyncadd [#allocation3], %s237
      %s239 = sshll.u32 [#allocation2], 4
      %s240 = int_to_ptr.vmem [resolvable:$true] %s239
      %245 = dma.vmem_to_hbm [thread:$0]  %s240, 256, %s5, [#allocation3], 128, 128, 8
    $region25: #{tpu_custom_call.1} parent=1 // pred_fallthru
      _
    // Predicated region
    $region26: #{tpu_custom_call.1} parent=1 // pred_check
      _
    $region27: #{tpu_custom_call.1} parent=1 // pred_check_branch
      %247 = sbr.rel (0) target = $region29
    $region28: #{tpu_custom_call.1} parent=1 // pred_region
      %248 = dma.done [#allocation3], 256
    $region29: #{tpu_custom_call.1} parent=1 // pred_fallthru
      _
    %249 = vsyncpa [#allocation3], 1

// kernel: tpu_custom_call.1
$region0: #{tpu_custom_call.1}
  #allocation0 [shape = 'u32[]', space=smem, size = 0x4, offset = 0x4, fixed_abs, tag = 'smem constant byte address 0x4 - core index']
  #allocation1 [shape = 'u32[144,128]{1,0:T(1,128)}', space=vmem, size = 0x12000, scoped, tag = 'internal scratch']
  %s0 = inlined_call_operand.vmem [shape: f32[16,32], index: 0, kind: input, shape index: {}]
  %s1 = inlined_call_operand.vmem [shape: f32[32,128], index: 1, kind: input, shape index: {}]
  %s2 = inlined_call_operand.vmem [shape: f32[1,128], index: 2, kind: input, shape index: {}]
  %s3 = inlined_call_operand.vmem [shape: f32[128,32], index: 3, kind: input, shape index: {}]
  %s4 = inlined_call_operand.vmem [shape: f32[1,32], index: 4, kind: input, shape index: {}]
  %s5 = inlined_call_operand.hbm [shape: f32[16,32], index: 5, kind: output, shape index: {}]
  %s6 = sld [smem:[#allocation0]]
  $region30: #{tpu_custom_call.1} parent=0
    _
  %s8 = ssub.s32 1, %s6
  %s9 = scalar_select 0, %s8, %s6
  $region1: #{tpu_custom_call.1} parent=0
    #allocation2 [shape = 'u8[8192]{0}', space=vmem, size = 0x2000, scoped, tag = 'output window, operand 0, single buffered']
    #allocation3 [shape = 's32[1]{0}', space=sflag, size = 0x4, scoped, tag = 'scoped memory for tpu_custom_call.1']
    %10 = vsyncpa [#allocation3], 0
    // Predicated region
    $region2: #{tpu_custom_call.1} parent=1 // pred_check
      _
    $region3: #{tpu_custom_call.1} parent=1 // pred_check_branch
      %12 = sbr.rel (0) target = $region5
    $region4: #{tpu_custom_call.1} parent=1 // pred_region
      _
    $region5: #{tpu_custom_call.1} parent=1 // pred_fallthru
      _
    // Predicated region
    $region6: #{tpu_custom_call.1} parent=1 // pred_check
      _
    $region7: #{tpu_custom_call.1} parent=1 // pred_check_branch
      %14 = sbr.rel (0) target = $region9
    $region8: #{tpu_custom_call.1} parent=1 // pred_region
      _
    $region9: #{tpu_custom_call.1} parent=1 // pred_fallthru
      _
    // Predicated region
    $region10: #{tpu_custom_call.1} parent=1 // pred_check
      _
    $region11: #{tpu_custom_call.1} parent=1 // pred_check_branch
      %16 = sbr.rel (0) target = $region13
    $region12: #{tpu_custom_call.1} parent=1 // pred_region
      _
    $region13: #{tpu_custom_call.1} parent=1 // pred_fallthru
      _
    // Predicated region
    $region14: #{tpu_custom_call.1} parent=1 // pred_check
      _
    $region15: #{tpu_custom_call.1} parent=1 // pred_check_branch
      %18 = sbr.rel (0) target = $region17
    $region16: #{tpu_custom_call.1} parent=1 // pred_region
      _
    $region17: #{tpu_custom_call.1} parent=1 // pred_fallthru
      _
    // Predicated region
    $region18: #{tpu_custom_call.1} parent=1 // pred_check
      _
    $region19: #{tpu_custom_call.1} parent=1 // pred_check_branch
      %20 = sbr.rel (0) target = $region21
    $region20: #{tpu_custom_call.1} parent=1 // pred_region
      _
    $region21: #{tpu_custom_call.1} parent=1 // pred_fallthru
      _
    %v21 = vld [vmem:[%s0] sm:$0xff]
    %v22 = vld [vmem:[%s0 + $0x8] sm:$0xff]
    %v23 = vld [vmem:[%s1] sm:$0xff]
    %v24 = vld [vmem:[%s1 + $0x8] sm:$0xff]
    %v25 = vld [vmem:[%s1 + $0x10] sm:$0xff]
    %v26 = vld [vmem:[%s1 + $0x18] sm:$0xff]
    %v27 = vld [vmem:[%s2] sm:$0x1]
    %v29 = vlaneseq
    %v30 = vshrl.u32 %v29, 7
    %v31 = vsub.s32 0, %v30
    %v32 = vrot.slane %v27, %v31
    %vm34 = vcmask 261120
    %v36 = vsel %vm34, %v21, 0
    %v39 = vsel %vm34, %v22, 0
    %41 = vmatprep.subr.mxu0 0.0
    %42 = vmatpush1.msra.mxu0 %v23
    %43 = vmatprep.subr.mxu0 0.0
    %44 = vmatpush1.msra.mxu0 %v24
    %45 = vmatprep.subr.mxu0 0.0
    %46 = vmatpush1.msra.mxu0 %v25
    %47 = vmatprep.subr.mxu0 0.0
    %48 = vmatpush1.msra.mxu0 %v26
    %49 = vmatprep.subr.mxu0 0.0
    %50 = vmatpush1.msra.mxu0 0.0
    %51 = vmatprep.subr.mxu0 0.0
    %52 = vmatpush1.msra.mxu0 0.0
    %53 = vmatprep.subr.mxu0 0.0
    %54 = vmatpush1.msra.mxu0 0.0
    %55 = vmatprep.subr.mxu0 0.0
    %56 = vmatpush1.msra.mxu0 0.0
    %57 = vmatprep.subr.mxu0 0.0
    %58 = vmatpush1.msra.mxu0 0.0
    %59 = vmatprep.subr.mxu0 0.0
    %60 = vmatpush1.msra.mxu0 0.0
    %61 = vmatprep.subr.mxu0 0.0
    %62 = vmatpush1.msra.mxu0 0.0
    %63 = vmatprep.subr.mxu0 0.0
    %64 = vmatpush1.msra.mxu0 0.0
    %65 = vmatprep.subr.mxu0 0.0
    %66 = vmatpush1.msra.mxu0 0.0
    %67 = vmatprep.subr.mxu0 0.0
    %68 = vmatpush1.msra.mxu0 0.0
    %69 = vmatprep.subr.mxu0 0.0
    %70 = vmatpush1.msra.mxu0 0.0
    %71 = vmatprep.subr.mxu0 0.0
    %72 = vmatpush1.msra.mxu0 0.0
    %73 = vmatprep.subr.mxu0 0.0
    %74 = vmatpush1.msra.mxu0 0.0
    %75 = vmatprep.subr.mxu0 0.0
    %76 = vmatpush1.msra.mxu0 0.0
    %77 = vmatprep.subr.mxu0 0.0
    %78 = vmatpush1.msra.mxu0 0.0
    %79 = vmatprep.subr.mxu0 0.0
    %80 = vmatpush1.msra.mxu0 0.0
    %81 = vmatprep.subr.mxu0 0.0
    %82 = vmatpush1.msra.mxu0 0.0
    %83 = vmatprep.subr.mxu0 0.0
    %84 = vmatpush1.msra.mxu0 0.0
    %85 = vmatprep.subr.mxu0 0.0
    %86 = vmatpush1.msra.mxu0 0.0
    %87 = vmatprep.subr.mxu0 0.0
    %88 = vmatpush1.msra.mxu0 0.0
    %89 = vmatprep.subr.mxu0 0.0
    %90 = vmatpush1.msra.mxu0 0.0
    %91 = vmatprep.subr.mxu0 0.0
    %92 = vmatpush1.msra.mxu0 0.0
    %93 = vmatprep.subr.mxu0 0.0
    %94 = vmatpush1.msra.mxu0 0.0
    %95 = vmatprep.subr.mxu0 0.0
    %96 = vmatpush1.msra.mxu0 0.0
    %97 = vmatprep.subr.mxu0 0.0
    %98 = vmatpush1.msra.mxu0 0.0
    %99 = vmatprep.subr.mxu0 0.0
    %100 = vmatpush1.msra.mxu0 0.0
    %101 = vmatprep.subr.mxu0 0.0
    %102 = vmatpush1.msra.mxu0 0.0
    %103 = vmatprep.subr.mxu0 0.0
    %104 = vmatpush1.msra.mxu0 0.0
    %105 = vmatprep.mubr.f32.mxu0 0.0
    %106 = vmatmul.mubr.f32.gmra.mrb[0].mxu0 %v36
    %v107 = vpop.f32.mrb[0].mxu0
    %v108 = vadd.f32 %v32, %v107
    %v109 = vpop.f32.mrb[0].mxu0
    %110 = vmatprep.mubr.f32.mxu0 0.0
    %111 = vmatmul.mubr.f32.gmra.mrb[0].mxu0 %v39
    %v112 = vpop.f32.mrb[0].mxu0
    %v113 = vadd.f32 %v32, %v112
    %v114 = vpop.f32.mrb[0].mxu0
    %115 = vdwg.mxu0
    %v116 = vmul.f32 %v108, 0.5
    %v117 = vmul.f32 %v113, 0.5
    %v118 = vmul.f32 %v108, 0.044715
    %v119 = vmul.f32 %v113, 0.044715
    %v120 = vmul.f32 %v118, %v108
    %v121 = vmul.f32 %v119, %v113
    %v122 = vmul.f32 %v120, %v108
    %v123 = vmul.f32 %v121, %v113
    %v124 = vadd.f32 %v108, %v122
    %v125 = vadd.f32 %v113, %v123
    %v126 = vmul.f32 %v124, 0.7978846
    %v127 = vmul.f32 %v125, 0.7978846
    %v128 = vtanh.pop %v126
    %v129 = vtanh.pop %v127
    %v130 = vadd.f32 %v128, 1.0
    %v131 = vadd.f32 %v129, 1.0
    %v132 = vmul.f32 %v116, %v130
    %v133 = vmul.f32 %v117, %v131
    %v134 = vld [vmem:[%s3] sm:$0xff]
    %v135 = vld [vmem:[%s3 + $0x8] sm:$0xff]
    %v136 = vld [vmem:[%s3 + $0x10] sm:$0xff]
    %v137 = vld [vmem:[%s3 + $0x18] sm:$0xff]
    %v138 = vld [vmem:[%s3 + $0x20] sm:$0xff]
    %v139 = vld [vmem:[%s3 + $0x28] sm:$0xff]
    %v140 = vld [vmem:[%s3 + $0x30] sm:$0xff]
    %v141 = vld [vmem:[%s3 + $0x38] sm:$0xff]
    %v142 = vld [vmem:[%s3 + $0x40] sm:$0xff]
    %v143 = vld [vmem:[%s3 + $0x48] sm:$0xff]
    %v144 = vld [vmem:[%s3 + $0x50] sm:$0xff]
    %v145 = vld [vmem:[%s3 + $0x58] sm:$0xff]
    %v146 = vld [vmem:[%s3 + $0x60] sm:$0xff]
    %v147 = vld [vmem:[%s3 + $0x68] sm:$0xff]
    %v148 = vld [vmem:[%s3 + $0x70] sm:$0xff]
    %v149 = vld [vmem:[%s3 + $0x78] sm:$0xff]
    %v150 = vld [vmem:[%s4] sm:$0x1]
    %v152 = vlaneseq
    %v153 = vshrl.u32 %v152, 7
    %v154 = vsub.s32 0, %v153
    %v155 = vrot.slane %v150, %v154
    %157 = vmatprep.subr.mxu0 0.0
    %158 = vmatpush1.msra.mxu0 %v134
    %159 = vmatprep.subr.mxu0 0.0
    %160 = vmatpush1.msra.mxu0 %v135
    %161 = vmatprep.subr.mxu0 0.0
    %162 = vmatpush1.msra.mxu0 %v136
    %163 = vmatprep.subr.mxu0 0.0
    %164 = vmatpush1.msra.mxu0 %v137
    %165 = vmatprep.subr.mxu0 0.0
    %166 = vmatpush1.msra.mxu0 %v138
    %167 = vmatprep.subr.mxu0 0.0
    %168 = vmatpush1.msra.mxu0 %v139
    %169 = vmatprep.subr.mxu0 0.0
    %170 = vmatpush1.msra.mxu0 %v140
    %171 = vmatprep.subr.mxu0 0.0
    %172 = vmatpush1.msra.mxu0 %v141
    %173 = vmatprep.subr.mxu0 0.0
    %174 = vmatpush1.msra.mxu0 %v142
    %175 = vmatprep.subr.mxu0 0.0
    %176 = vmatpush1.msra.mxu0 %v143
    %177 = vmatprep.subr.mxu0 0.0
    %178 = vmatpush1.msra.mxu0 %v144
    %179 = vmatprep.subr.mxu0 0.0
    %180 = vmatpush1.msra.mxu0 %v145
    %181 = vmatprep.subr.mxu0 0.0
    %182 = vmatpush1.msra.mxu0 %v146
    %183 = vmatprep.subr.mxu0 0.0
    %184 = vmatpush1.msra.mxu0 %v147
    %185 = vmatprep.subr.mxu0 0.0
    %186 = vmatpush1.msra.mxu0 %v148
    %187 = vmatprep.subr.mxu0 0.0
    %188 = vmatpush1.msra.mxu0 %v149
    %189 = vmatprep.subr.mxu0 0.0
    %190 = vmatpush1.msra.mxu0 0.0
    %191 = vmatprep.subr.mxu0 0.0
    %192 = vmatpush1.msra.mxu0 0.0
    %193 = vmatprep.subr.mxu0 0.0
    %194 = vmatpush1.msra.mxu0 0.0
    %195 = vmatprep.subr.mxu0 0.0
    %196 = vmatpush1.msra.mxu0 0.0
    %197 = vmatprep.subr.mxu0 0.0
    %198 = vmatpush1.msra.mxu0 0.0
    %199 = vmatprep.subr.mxu0 0.0
    %200 = vmatpush1.msra.mxu0 0.0
    %201 = vmatprep.subr.mxu0 0.0
    %202 = vmatpush1.msra.mxu0 0.0
    %203 = vmatprep.subr.mxu0 0.0
    %204 = vmatpush1.msra.mxu0 0.0
    %205 = vmatprep.subr.mxu0 0.0
    %206 = vmatpush1.msra.mxu0 0.0
    %207 = vmatprep.subr.mxu0 0.0
    %208 = vmatpush1.msra.mxu0 0.0
    %209 = vmatprep.subr.mxu0 0.0
    %210 = vmatpush1.msra.mxu0 0.0
    %211 = vmatprep.subr.mxu0 0.0
    %212 = vmatpush1.msra.mxu0 0.0
    %213 = vmatprep.subr.mxu0 0.0
    %214 = vmatpush1.msra.mxu0 0.0
    %215 = vmatprep.subr.mxu0 0.0
    %216 = vmatpush1.msra.mxu0 0.0
    %217 = vmatprep.subr.mxu0 0.0
    %218 = vmatpush1.msra.mxu0 0.0
    %219 = vmatprep.subr.mxu0 0.0
    %220 = vmatpush1.msra.mxu0 0.0
    %221 = vmatprep.mubr.f32.mxu0 0.0
    %222 = vmatmul.mubr.f32.gmra.mrb[0].mxu0 %v132
    %v223 = vpop.f32.mrb[0].mxu0
    %v224 = vadd.f32 %v155, %v223
    %v225 = vpop.f32.mrb[0].mxu0
    %226 = vmatprep.mubr.f32.mxu0 0.0
    %227 = vmatmul.mubr.f32.gmra.mrb[0].mxu0 %v133
    %v228 = vpop.f32.mrb[0].mxu0
    %v229 = vadd.f32 %v155, %v228
    %v230 = vpop.f32.mrb[0].mxu0
    %231 = vdwg.mxu0
    %232 = vst.msk [vmem:[#allocation2] sm:$0xff] %vm34, %v224
    %233 = vst.msk [vmem:[#allocation2 + $0x8] sm:$0xff] %vm34, %v229
    // Predicated region
    $region22: #{tpu_custom_call.1} parent=1 // pred_check
      _
    $region23: #{tpu_custom_call.1} parent=1 // pred_check_branch
      %235 = sbr.rel (0) target = $region25
    $region24: #{tpu_custom_call.1} parent=1 // pred_region
      %s237 = ssub.s32 256, 256
      %238 = vsyncadd [#allocation3], %s237
      %s239 = sshll.u32 [#allocation2], 4
      %s240 = int_to_ptr.vmem [resolvable:$true] %s239
      %245 = dma.vmem_to_hbm [thread:$0]  %s240, 256, %s5, [#allocation3], 128, 128, 8
    $region25: #{tpu_custom_call.1} parent=1 // pred_fallthru
      _
    // Predicated region
    $region26: #{tpu_custom_call.1} parent=1 // pred_check
      _
    $region27: #{tpu_custom_call.1} parent=1 // pred_check_branch
      %247 = sbr.rel (0) target = $region29
    $region28: #{tpu_custom_call.1} parent=1 // pred_region
      %248 = dma.done [#allocation3], 256
    $region29: #{tpu_custom_call.1} parent=1 // pred_fallthru
      _
    %249 = vsyncpa [#allocation3], 1

</llo_original>
